<compile_context>
chip_gen: v7x
topology: tpu7x:2x2x1
jax: 0.10.0
libtpu: 0.0.40
codegen_flags: <defaults>
</compile_context>

<pallas_src>
import jax
import jax.numpy as jnp
from jax import lax
from jax.experimental import pallas as pl
from jax.experimental.pallas import tpu as pltpu


def _round_up(a: int, m: int) -> int:
    return (a + m - 1) // m * m


def logistic_kernel(x_ref, w_ref, b_ref, o_ref):
    # x_ref: (TB, Feff) VMEM (streamed)    w_ref: (K, Feff) VMEM (resident, lane-dense)
    # b_ref: (1, 1) f32 SMEM (scalar)      o_ref: (TB, K)
    logits = lax.dot_general(
        x_ref[...], w_ref[...],
        dimension_numbers=(((1,), (1,)), ((), ())),   # (TB,Feff) . (K,Feff) -> (TB,K)
        preferred_element_type=jnp.float32,
    )
    o_ref[...] = jax.nn.sigmoid(logits + b_ref[0, 0]).astype(o_ref.dtype)


@jax.jit
def logistic_regression(x, weight, bias):
    """x: (B, F), weight: (1, F), bias: (1,)  ->  (B, 1)  == sigmoid(x @ W^T + b)."""
    B, F = x.shape
    x_itemsize = jnp.dtype(x.dtype).itemsize
    out_itemsize = x_itemsize
    sublane = max(8, 32 // x_itemsize)          # 8 f32, 16 bf16, 32 int8/fp8

    # ---- narrow-F lane packing: k logical rows per kernel row so x tiles are lane-dense
    k = (128 // F) if (F < 128 and 128 % F == 0) else 1
    feff = k * F

    b_kpad = _round_up(B, k)
    if b_kpad != B:
        x = jnp.pad(x, ((0, b_kpad - B), (0, 0)))
    x_packed = x.reshape(b_kpad // k, feff)     # contiguous merge: free metadata reshape
    rows = b_kpad // k

    # block-diagonal lane-dense weight (k, k*F); k == 1 -> plain (1, F)
    w_packed = jnp.kron(jnp.eye(k, dtype=weight.dtype), weight.reshape(1, F))
    b_smem = bias.reshape(1, 1).astype(jnp.float32)

    # ---- batch-tile sizing by *lane-padded* bytes per row (x tile + out tile), ~8 MiB / step
    x_row_bytes = _round_up(feff, 128) * x_itemsize
    o_row_bytes = _round_up(k, 128) * out_itemsize
    row_bytes = x_row_bytes + o_row_bytes
    target_step_bytes = 8 * 1024 * 1024
    rows_target = max(sublane, (target_step_bytes // row_bytes) // sublane * sublane)
    # keep >= 4 grid steps when the batch allows it, so both v7x TensorCores get work
    rows_cap = _round_up(pl.cdiv(rows, 4), sublane)
    tb = max(sublane, min(rows_target, rows_cap))

    rows_pad = _round_up(rows, tb)
    if rows_pad != rows:
        x_packed = jnp.pad(x_packed, ((0, rows_pad - rows), (0, 0)))

    # ---- VMEM budget from padded footprints (x/out double-buffered by the pipeline)
    x_buf = tb * x_row_bytes
    o_buf = tb * o_row_bytes
    w_buf = _round_up(k, sublane) * _round_up(feff, 128) * x_itemsize
    vmem_needed = 2 * (x_buf + o_buf + w_buf) + (2 << 20)
    vmem_limit = int(min(max(vmem_needed, 16 << 20), 48 << 20))
    # TODO(synk): if F is so wide that the resident (k, Feff) weight tile itself overflows VMEM,
    # add a second "arbitrary" grid axis over F with an f32 accumulator and late bias+sigmoid.

    out = pl.pallas_call(
        logistic_kernel,
        out_shape=jax.ShapeDtypeStruct((rows_pad, k), x.dtype),
        grid_spec=pltpu.PrefetchScalarGridSpec(
            num_scalar_prefetch=0,
            grid=(rows_pad // tb,),
            in_specs=[
                pl.BlockSpec((tb, feff), lambda i: (i, 0)),           # streamed batch tiles
                pl.BlockSpec((k, feff), lambda i: (0, 0)),            # resident lane-dense weight
                pl.BlockSpec(memory_space=pltpu.MemorySpace.SMEM),    # scalar bias in SMEM
            ],
            out_specs=pl.BlockSpec((tb, k), lambda i: (i, 0)),
        ),
        compiler_params=pltpu.CompilerParams(
            dimension_semantics=("parallel",),                        # megacore sharding on v7x
            vmem_limit_bytes=vmem_limit,
        ),
        cost_estimate=pl.CostEstimate(
            flops=2 * B * F,
            transcendentals=B,
            bytes_accessed=B * F * x_itemsize + F * x_itemsize + B * out_itemsize,
        ),
    )(x_packed, w_packed, b_smem)

    # row-major unpack restores the original batch order
    return out.reshape(rows_pad * k, 1)[:B]


if __name__ == "__main__":
    key = jax.random.PRNGKey(0)
    kx, kw, kb = jax.random.split(key, 3)

    batch, n_features = 8, 32
    x = jax.random.normal(kx, (batch, n_features), dtype=jnp.float32)

    # Deterministic parameter init (mimics nn.Linear uniform(-1/sqrt(F), 1/sqrt(F)))
    bound = 1.0 / jnp.sqrt(jnp.float32(n_features))
    weight = jax.random.uniform(kw, (1, n_features), jnp.float32, -bound, bound)
    bias = jax.random.uniform(kb, (1,), jnp.float32, -bound, bound)

    y = logistic_regression(x, weight, bias)
    jax.block_until_ready(y)

    # Reference check in plain JAX
    y_ref = jax.nn.sigmoid(x @ weight.T + bias)
    assert y.shape == (batch, 1)
    assert jnp.allclose(y, y_ref, atol=1e-5), "mismatch vs reference"
    print("KERNEL_OK")
</pallas_src>

<mosaic_0001>
module attributes {stable_mosaic.version = 11 : i64} {
  func.func @logistic_kernel(%arg0: i32, %arg1: memref<8x128xf32, #tpu.memory_space<vmem>>, %arg2: memref<4x128xf32, #tpu.memory_space<vmem>>, %arg3: memref<1x1xf32, #tpu.memory_space<smem>>, %arg4: memref<8x4xf32, #tpu.memory_space<vmem>>) attributes {dimension_semantics = [#tpu.dimension_semantics<parallel>], iteration_bounds = array<i64: 1>, scalar_prefetch = 0 : i64, scratch_operands = 0 : i64, tpu.core_type = #tpu.core_type<tc>, window_params = [{transform_indices = @transform_0, window_bounds = array<i64: 8, 128>}, {pipeline_mode = #tpu.pipeline_mode<synchronous>, transform_indices = @transform_1, window_bounds = array<i64: 4, 128>}, {transform_indices = @transform_2, window_bounds = array<i64: 1, 1>}, {transform_indices = @transform_3, window_bounds = array<i64: 8, 4>}]} {
    %c0 = arith.constant 0 : index
    %c0_0 = arith.constant 0 : index
    %0 = vector.load %arg1[%c0, %c0_0] : memref<8x128xf32, #tpu.memory_space<vmem>>, vector<8x128xf32>
    %c0_1 = arith.constant 0 : index
    %c0_2 = arith.constant 0 : index
    %1 = vector.load %arg2[%c0_1, %c0_2] : memref<4x128xf32, #tpu.memory_space<vmem>>, vector<4x128xf32>
    %cst = arith.constant dense<0.000000e+00> : vector<8x4xf32>
    %2 = tpu.matmul %0, %1, %cst {dimension_numbers = #tpu.dot_dimension_numbers<[1], [1], [0], [0], [0, 0, 1, 0], [], []>} : vector<8x128xf32>, vector<4x128xf32>, vector<8x4xf32> -> vector<8x4xf32>
    %c0_3 = arith.constant 0 : index
    %c0_4 = arith.constant 0 : index
    %3 = memref.load %arg3[%c0_3, %c0_4] : memref<1x1xf32, #tpu.memory_space<smem>>
    %4 = vector.broadcast %3 : f32 to vector<8x4xf32>
    %5 = arith.addf %2, %4 : vector<8x4xf32>
    %6 = arith.negf %5 : vector<8x4xf32>
    %7 = math.exp %6 : vector<8x4xf32>
    %cst_5 = arith.constant 1.000000e+00 : f32
    %8 = vector.broadcast %cst_5 : f32 to vector<8x4xf32>
    %9 = arith.addf %8, %7 : vector<8x4xf32>
    %10 = arith.divf %8, %9 : vector<8x4xf32>
    %c0_6 = arith.constant 0 : index
    %c0_7 = arith.constant 0 : index
    %11 = vector.load %arg4[%c0_6, %c0_7] : memref<8x4xf32, #tpu.memory_space<vmem>>, vector<8x4xf32>
    tpu.vector_store %arg4[%c0_6, %c0_7], %10 {strides = array<i32>} : memref<8x4xf32, #tpu.memory_space<vmem>>, vector<8x4xf32>,
    return
  }
  func.func @transform_0(%arg0: i32) -> (i32, i32) {
    %c0_i32 = arith.constant 0 : i32
    %c0_i32_0 = arith.constant 0 : i32
    return %arg0, %c0_i32 : i32, i32
  }
  func.func @transform_1(%arg0: i32) -> (i32, i32) {
    %c0_i32 = arith.constant 0 : i32
    %c0_i32_0 = arith.constant 0 : i32
    %c0_i32_1 = arith.constant 0 : i32
    return %c0_i32, %c0_i32_0 : i32, i32
  }
  func.func @transform_2(%arg0: i32) -> (i32, i32) {
    %c0_i32 = arith.constant 0 : i32
    %c0_i32_0 = arith.constant 0 : i32
    %c0_i32_1 = arith.constant 0 : i32
    return %c0_i32, %c0_i32_0 : i32, i32
  }
  func.func @transform_3(%arg0: i32) -> (i32, i32) {
    %c0_i32 = arith.constant 0 : i32
    %c0_i32_0 = arith.constant 0 : i32
    return %arg0, %c0_i32 : i32, i32
  }
}

</mosaic_0001>

<llo_original>
// kernel: logistic_regression.1
$region0: #{logistic_regression.1}
  #allocation0 [shape = 'u32[]', space=smem, size = 0x4, offset = 0x4, fixed_abs, tag = 'smem constant byte address 0x4 - core index']
  #allocation1 [shape = 'u32[144,128]{1,0:T(1,128)}', space=vmem, size = 0x12000, scoped, tag = 'internal scratch']
  #allocation2 [shape = 'f32[1,1]{1,0:T(1,128)S(6)}', space=smem, size = 0x200, scoped, tag = 'scoped memory for logistic_regression.1']
  %s0 = inlined_call_operand.vmem [shape: f32[8,128], index: 0, kind: input, shape index: {}]
  %s1 = inlined_call_operand.vmem [shape: f32[4,128], index: 1, kind: input, shape index: {}]
  %s2 = inlined_call_operand.<no memory space> [shape: f32[1,1], index: 2, kind: input, shape index: {}]
  %s3 = inlined_call_operand.vmem [shape: f32[8,4], index: 3, kind: output, shape index: {}]
  %s4 = sld [smem:[#allocation0]]
  $region22: #{logistic_regression.1} parent=0
    _
  %s6 = ssub.s32 1, %s4
  %s7 = scalar_select 0, %s6, %s4
  %8 = sst [smem:[#allocation2]] %s2
  // Predicated region
  $region2: #{logistic_regression.1} parent=0 // pred_check
    _
  $region3: #{logistic_regression.1} parent=0 // pred_check_branch
    %10 = sbr.rel (0) target = $region5
  $region4: #{logistic_regression.1} parent=0 // pred_region
    _
  $region5: #{logistic_regression.1} parent=0 // pred_fallthru
    _
  // Predicated region
  $region6: #{logistic_regression.1} parent=0 // pred_check
    _
  $region7: #{logistic_regression.1} parent=0 // pred_check_branch
    %12 = sbr.rel (0) target = $region9
  $region8: #{logistic_regression.1} parent=0 // pred_region
    _
  $region9: #{logistic_regression.1} parent=0 // pred_fallthru
    _
  // Predicated region
  $region10: #{logistic_regression.1} parent=0 // pred_check
    _
  $region11: #{logistic_regression.1} parent=0 // pred_check_branch
    %14 = sbr.rel (0) target = $region13
  $region12: #{logistic_regression.1} parent=0 // pred_region
    _
  $region13: #{logistic_regression.1} parent=0 // pred_fallthru
    _
  %v15 = vld [vmem:[%s0] sm:$0xff]
  %v16 = vld [vmem:[%s1] sm:$0xf]
  %s17 = sld [smem:[#allocation2]]
  %v18 = vstv %s17
  %19 = vmatprep.subr.mxu0 0.0
  %20 = vmatpush1.xpose.msra.mxu0 %v16
  %21 = vmatprep.subr.mxu0 0.0
  %22 = vmatpush1.xpose.msra.mxu0 0.0
  %23 = vmatprep.subr.mxu0 0.0
  %24 = vmatpush1.xpose.msra.mxu0 0.0
  %25 = vmatprep.subr.mxu0 0.0
  %26 = vmatpush1.xpose.msra.mxu0 0.0
  %27 = vmatprep.subr.mxu0 0.0
  %28 = vmatpush1.xpose.msra.mxu0 0.0
  %29 = vmatprep.subr.mxu0 0.0
  %30 = vmatpush1.xpose.msra.mxu0 0.0
  %31 = vmatprep.subr.mxu0 0.0
  %32 = vmatpush1.xpose.msra.mxu0 0.0
  %33 = vmatprep.subr.mxu0 0.0
  %34 = vmatpush1.xpose.msra.mxu0 0.0
  %35 = vmatprep.subr.mxu0 0.0
  %36 = vmatpush1.xpose.msra.mxu0 0.0
  %37 = vmatprep.subr.mxu0 0.0
  %38 = vmatpush1.xpose.msra.mxu0 0.0
  %39 = vmatprep.subr.mxu0 0.0
  %40 = vmatpush1.xpose.msra.mxu0 0.0
  %41 = vmatprep.subr.mxu0 0.0
  %42 = vmatpush1.xpose.msra.mxu0 0.0
  %43 = vmatprep.subr.mxu0 0.0
  %44 = vmatpush1.xpose.msra.mxu0 0.0
  %45 = vmatprep.subr.mxu0 0.0
  %46 = vmatpush1.xpose.msra.mxu0 0.0
  %47 = vmatprep.subr.mxu0 0.0
  %48 = vmatpush1.xpose.msra.mxu0 0.0
  %49 = vmatprep.subr.mxu0 0.0
  %50 = vmatpush1.xpose.msra.mxu0 0.0
  %51 = vmatprep.subr.mxu0 0.0
  %52 = vmatpush1.xpose.msra.mxu0 0.0
  %53 = vmatprep.subr.mxu0 0.0
  %54 = vmatpush1.xpose.msra.mxu0 0.0
  %55 = vmatprep.subr.mxu0 0.0
  %56 = vmatpush1.xpose.msra.mxu0 0.0
  %57 = vmatprep.subr.mxu0 0.0
  %58 = vmatpush1.xpose.msra.mxu0 0.0
  %59 = vmatprep.subr.mxu0 0.0
  %60 = vmatpush1.xpose.msra.mxu0 0.0
  %61 = vmatprep.subr.mxu0 0.0
  %62 = vmatpush1.xpose.msra.mxu0 0.0
  %63 = vmatprep.subr.mxu0 0.0
  %64 = vmatpush1.xpose.msra.mxu0 0.0
  %65 = vmatprep.subr.mxu0 0.0
  %66 = vmatpush1.xpose.msra.mxu0 0.0
  %67 = vmatprep.subr.mxu0 0.0
  %68 = vmatpush1.xpose.msra.mxu0 0.0
  %69 = vmatprep.subr.mxu0 0.0
  %70 = vmatpush1.xpose.msra.mxu0 0.0
  %71 = vmatprep.subr.mxu0 0.0
  %72 = vmatpush1.xpose.msra.mxu0 0.0
  %73 = vmatprep.subr.mxu0 0.0
  %74 = vmatpush1.xpose.msra.mxu0 0.0
  %75 = vmatprep.subr.mxu0 0.0
  %76 = vmatpush1.xpose.msra.mxu0 0.0
  %77 = vmatprep.subr.mxu0 0.0
  %78 = vmatpush1.xpose.msra.mxu0 0.0
  %79 = vmatprep.subr.mxu0 0.0
  %80 = vmatpush1.xpose.msra.mxu0 0.0
  %81 = vmatprep.subr.mxu0 0.0
  %82 = vmatpush1.xpose.msra.mxu0 0.0
  %83 = vmatprep.mubr.f32.mxu0 0.0
  %84 = vmatmul.mubr.f32.gmra.mrb[0].mxu0 %v15
  %v85 = vpop.f32.mrb[0].mxu0
  %v86 = vadd.f32 %v18, %v85
  %v87 = vpop.f32.mrb[0].mxu0
  %88 = vdwg.mxu0
  %v89 = vxor.u32 %v86, 2147483648
  %v90 = vmul.f32 %v89, 1.442695
  %v91 = vpow.pop %v90
  %v92 = vadd.f32 %v91, 1.0
  %v93 = vrcp.pop %v92
  %v94 = vmul.f32 1.0, %v93
  %vm95 = vcmask 31744
  %96 = vst.msk [vmem:[%s3] sm:$0xff] %vm95, %v94
  // Predicated region
  $region14: #{logistic_regression.1} parent=0 // pred_check
    _
  $region15: #{logistic_regression.1} parent=0 // pred_check_branch
    %98 = sbr.rel (0) target = $region17
  $region16: #{logistic_regression.1} parent=0 // pred_region
    _
  $region17: #{logistic_regression.1} parent=0 // pred_fallthru
    _
  // Predicated region
  $region18: #{logistic_regression.1} parent=0 // pred_check
    _
  $region19: #{logistic_regression.1} parent=0 // pred_check_branch
    %100 = sbr.rel (0) target = $region21
  $region20: #{logistic_regression.1} parent=0 // pred_region
    _
  $region21: #{logistic_regression.1} parent=0 // pred_fallthru
    _

</llo_original>
